<compile_context>
chip_gen: v6e
topology: v6e:2x2x1
jax: 0.10.0
libtpu: 0.0.40
codegen_flags: <defaults>
</compile_context>

<pallas_src>
import jax
import jax.numpy as jnp
from jax.experimental import pallas as pl
from jax.experimental.pallas import tpu as pltpu

HIDDEN = 256


def _round_up(x, m):
    return (x + m - 1) // m * m


def _cdiv(a, b):
    return -(-a // b)


def _choose_tb(B, block_b):
    """Pick a batch tile: multiple of 16, <= ~block_b, >=2 grid steps when B allows,
    and padding waste bounded by ~one alignment step per tile (not round_up(B, 512))."""
    align = 16  # bf16 sublane packing granularity; keeps per-TC halves 8-row aligned
    if B <= 2 * align:
        return _round_up(max(B, 8), 8)          # tiny batch: one small tile
    num_tiles = max(2, _cdiv(B, block_b))       # >=2 so v7x's 2 TCs both get work
    return _round_up(_cdiv(B, num_tiles), align)


def sac_critic_kernel(x_ref, w1_ref, w2a_ref, w2b_ref, b2a_ref, b2b_ref,
                      w3a_ref, w3b_ref, b3_ref, q_ref):
    x = x_ref[...]                                              # (tb, d_in+1)

    # layer 1 for BOTH nets in one MXU call; b1 folded in via the ones column of x
    h = jnp.dot(x, w1_ref[...], preferred_element_type=jnp.float32)   # (tb, 512)
    h = jnp.maximum(h, 0.0).astype(w2a_ref.dtype)                      # single ReLU stream

    def head(h_half, w2, b2, w3row):
        # layer 2: the big 256x256 MXU matmul, f32 accumulation; bias/ReLU on VPU in f32
        z = jnp.dot(h_half, w2, preferred_element_type=jnp.float32) + b2
        z = jnp.maximum(z, 0.0)
        # layer 3 ([256,1]): VPU multiply + lane reduction instead of an N=1 MXU matmul
        return jnp.sum(z * w3row.astype(jnp.float32), axis=-1, keepdims=True)

    q1 = head(h[:, :HIDDEN], w2a_ref[...], b2a_ref[...], w3a_ref[...])
    q2 = head(h[:, HIDDEN:], w2b_ref[...], b2b_ref[...], w3b_ref[...])

    # merged (tb, 2) output: lane 0 = q1, lane 1 = q2 (single store stream)
    q_ref[...] = (jnp.concatenate([q1, q2], axis=-1) + b3_ref[...]).astype(q_ref.dtype)


def _prep_weights(params, compute_dtype):
    w1_1, b1_1, w2_1, b2_1, w3_1, b3_1 = params["net1"]
    w1_2, b1_2, w2_2, b2_2, w3_2, b3_2 = params["net2"]
    # layer 1: stack the twin nets along N and fold b1 in as an extra K row
    w1 = jnp.concatenate(
        [jnp.concatenate([w1_1, b1_1], axis=0),     # [d_in+1, 256]
         jnp.concatenate([w1_2, b1_2], axis=0)],    # [d_in+1, 256]
        axis=1).astype(compute_dtype)               # [d_in+1, 512]
    return [
        w1,
        w2_1.astype(compute_dtype),                 # [256, 256]
        w2_2.astype(compute_dtype),                 # [256, 256]
        b2_1.astype(jnp.float32),                   # [1, 256]
        b2_2.astype(jnp.float32),                   # [1, 256]
        w3_1.T.astype(compute_dtype),               # [1, 256] (row form of [256, 1])
        w3_2.T.astype(compute_dtype),               # [1, 256]
        jnp.concatenate([b3_1, b3_2], axis=-1).astype(jnp.float32),   # [1, 2]
    ]


def sac_critic_forward(states, actions, params, *,
                       compute_dtype=jnp.bfloat16, block_b=1024):
    B, d_s = states.shape
    d_a = actions.shape[1]
    d_in = d_s + d_a

    tb = _choose_tb(B, block_b)
    b_pad = _round_up(B, tb)

    # one wrapper-side concat (negligible bytes, fuses with the pad); ones column folds b1
    x = jnp.concatenate(
        [states, actions, jnp.ones((B, 1), states.dtype)], axis=-1)
    if b_pad != B:
        x = jnp.pad(x, ((0, b_pad - B), (0, 0)))
    x = x.astype(compute_dtype)

    weights = _prep_weights(params, compute_dtype)
    grid = (b_pad // tb,)

    def _tiled(shape):
        return pl.BlockSpec(shape, lambda i: (i, 0))

    def _resident(arr):
        return pl.BlockSpec(arr.shape, lambda i: (0, 0))   # constant -> stays VMEM-resident

    in_specs = [_tiled((tb, d_in + 1))] + [_resident(w) for w in weights]

    # cost hint for XLA's scheduler
    flops = 2 * b_pad * ((d_in + 1) * 2 * HIDDEN + 2 * HIDDEN * HIDDEN + 2 * HIDDEN)
    w_bytes = sum(int(w.size) * w.dtype.itemsize for w in weights)
    bytes_accessed = int(x.size) * x.dtype.itemsize + w_bytes + b_pad * 2 * 4

    # VMEM budget: double-buffered x / out tiles + resident weights + f32 intermediates
    vmem_est = (2 * 2 * tb * (d_in + 1) * x.dtype.itemsize
                + 2 * 2 * tb * 2 * 4
                + w_bytes
                + 8 * tb * 2 * HIDDEN * 4)
    vmem_limit = int(min(max(vmem_est + (4 << 20), 32 << 20), 64 << 20))

    q = pl.pallas_call(
        sac_critic_kernel,
        out_shape=jax.ShapeDtypeStruct((b_pad, 2), jnp.float32),
        grid=grid,
        in_specs=in_specs,
        out_specs=_tiled((tb, 2)),
        compiler_params=pltpu.CompilerParams(
            dimension_semantics=("parallel",),      # batch axis shards across v7x's 2 TCs
            vmem_limit_bytes=vmem_limit),
        cost_estimate=pl.CostEstimate(flops=flops, transcendentals=0,
                                      bytes_accessed=bytes_accessed),
    )(x, *weights)

    return q[:B, 0:1], q[:B, 1:2]


def _init_linear(key, fan_in, fan_out):
    # deterministic init mimicking nn.Linear's U(-1/sqrt(fan_in), 1/sqrt(fan_in))
    kw, kb = jax.random.split(key)
    bound = 1.0 / jnp.sqrt(jnp.float32(fan_in))
    w = jax.random.uniform(kw, (fan_in, fan_out), jnp.float32, -bound, bound)
    b = jax.random.uniform(kb, (1, fan_out), jnp.float32, -bound, bound)
    return w, b


def init_sac_critic_params(key, state_dim, action_dim, hidden=HIDDEN):
    d_in = state_dim + action_dim
    keys = jax.random.split(key, 6)

    def make_net(k3):
        w1, b1 = _init_linear(k3[0], d_in, hidden)
        w2, b2 = _init_linear(k3[1], hidden, hidden)
        w3, b3 = _init_linear(k3[2], hidden, 1)
        return [w1, b1, w2, b2, w3, b3]

    return {"net1": make_net(keys[:3]), "net2": make_net(keys[3:])}


def _reference_forward(states, actions, params):
    x = jnp.concatenate([states, actions], axis=-1).astype(jnp.float32)

    def net(p):
        w1, b1, w2, b2, w3, b3 = p
        h = jnp.maximum(x @ w1 + b1, 0.0)
        h = jnp.maximum(h @ w2 + b2, 0.0)
        return h @ w3 + b3

    return net(params["net1"]), net(params["net2"])


if __name__ == "__main__":
    key = jax.random.PRNGKey(0)
    k_params, k_s, k_a, k_s2, k_a2 = jax.random.split(key, 5)

    batch = 2
    state_dim = 8
    action_dim = 4

    params = init_sac_critic_params(k_params, state_dim, action_dim)
    states = jax.random.normal(k_s, (batch, state_dim), jnp.float32)
    actions = jax.random.normal(k_a, (batch, action_dim), jnp.float32)

    r1, r2 = _reference_forward(states, actions, params)

    # exact-precision path (f32 operands): tight check against the pure-JAX reference
    q1, q2 = sac_critic_forward(states, actions, params, compute_dtype=jnp.float32)
    jax.block_until_ready((q1, q2))
    assert q1.shape == (batch, 1) and q2.shape == (batch, 1)
    assert jnp.allclose(q1, r1, atol=1e-4), "net1 mismatch vs reference (f32)"
    assert jnp.allclose(q2, r2, atol=1e-4), "net2 mismatch vs reference (f32)"

    # default fast path (bf16 matmul operands, f32 accumulation): loose check
    q1b, q2b = sac_critic_forward(states, actions, params)
    jax.block_until_ready((q1b, q2b))
    assert q1b.shape == (batch, 1) and q2b.shape == (batch, 1)
    assert jnp.allclose(q1b, r1, atol=5e-2, rtol=5e-2), "net1 mismatch vs reference (bf16)"
    assert jnp.allclose(q2b, r2, atol=5e-2, rtol=5e-2), "net2 mismatch vs reference (bf16)"

    # multi-tile path (exercises grid>=2 + bounded batch padding), f32 for tight check
    batch2 = 100
    states2 = jax.random.normal(k_s2, (batch2, state_dim), jnp.float32)
    actions2 = jax.random.normal(k_a2, (batch2, action_dim), jnp.float32)
    r1b, r2b = _reference_forward(states2, actions2, params)
    q1c, q2c = sac_critic_forward(states2, actions2, params, compute_dtype=jnp.float32)
    jax.block_until_ready((q1c, q2c))
    assert q1c.shape == (batch2, 1) and q2c.shape == (batch2, 1)
    assert jnp.allclose(q1c, r1b, atol=1e-4), "net1 mismatch vs reference (multi-tile)"
    assert jnp.allclose(q2c, r2b, atol=1e-4), "net2 mismatch vs reference (multi-tile)"

    print("KERNEL_OK")
</pallas_src>

<mosaic_0001>
module attributes {stable_mosaic.version = 11 : i64} {
  func.func @sac_critic_kernel(%arg0: i32, %arg1: memref<8x13xf32, #tpu.memory_space<vmem>>, %arg2: memref<13x512xf32, #tpu.memory_space<vmem>>, %arg3: memref<256x256xf32, #tpu.memory_space<vmem>>, %arg4: memref<256x256xf32, #tpu.memory_space<vmem>>, %arg5: memref<1x256xf32, #tpu.memory_space<vmem>>, %arg6: memref<1x256xf32, #tpu.memory_space<vmem>>, %arg7: memref<1x256xf32, #tpu.memory_space<vmem>>, %arg8: memref<1x256xf32, #tpu.memory_space<vmem>>, %arg9: memref<1x2xf32, #tpu.memory_space<vmem>>, %arg10: memref<8x2xf32, #tpu.memory_space<vmem>>) attributes {dimension_semantics = [#tpu.dimension_semantics<parallel>], iteration_bounds = array<i64: 1>, scalar_prefetch = 0 : i64, scratch_operands = 0 : i64, tpu.core_type = #tpu.core_type<tc>, window_params = [{transform_indices = @transform_0, window_bounds = array<i64: 8, 13>}, {pipeline_mode = #tpu.pipeline_mode<synchronous>, transform_indices = @transform_1, window_bounds = array<i64: 13, 512>}, {pipeline_mode = #tpu.pipeline_mode<synchronous>, transform_indices = @transform_2, window_bounds = array<i64: 256, 256>}, {pipeline_mode = #tpu.pipeline_mode<synchronous>, transform_indices = @transform_3, window_bounds = array<i64: 256, 256>}, {pipeline_mode = #tpu.pipeline_mode<synchronous>, transform_indices = @transform_4, window_bounds = array<i64: 1, 256>}, {pipeline_mode = #tpu.pipeline_mode<synchronous>, transform_indices = @transform_5, window_bounds = array<i64: 1, 256>}, {pipeline_mode = #tpu.pipeline_mode<synchronous>, transform_indices = @transform_6, window_bounds = array<i64: 1, 256>}, {pipeline_mode = #tpu.pipeline_mode<synchronous>, transform_indices = @transform_7, window_bounds = array<i64: 1, 256>}, {pipeline_mode = #tpu.pipeline_mode<synchronous>, transform_indices = @transform_8, window_bounds = array<i64: 1, 2>}, {transform_indices = @transform_9, window_bounds = array<i64: 8, 2>}]} {
    %c0 = arith.constant 0 : index
    %c0_0 = arith.constant 0 : index
    %0 = vector.load %arg1[%c0, %c0_0] : memref<8x13xf32, #tpu.memory_space<vmem>>, vector<8x13xf32>
    %c0_1 = arith.constant 0 : index
    %c0_2 = arith.constant 0 : index
    %1 = vector.load %arg2[%c0_1, %c0_2] : memref<13x512xf32, #tpu.memory_space<vmem>>, vector<13x512xf32>
    %cst = arith.constant dense<0.000000e+00> : vector<8x512xf32>
    %2 = tpu.matmul %0, %1, %cst {dimension_numbers = #tpu.dot_dimension_numbers<[1], [0], [0], [1], [0, 0, 1, 1], [], []>} : vector<8x13xf32>, vector<13x512xf32>, vector<8x512xf32> -> vector<8x512xf32>
    %cst_3 = arith.constant 0.000000e+00 : f32
    %3 = vector.broadcast %cst_3 : f32 to vector<8x512xf32>
    %4 = arith.maximumf %2, %3 : vector<8x512xf32>
    %5 = vector.extract_strided_slice %4 {offsets = [0, 0], sizes = [8, 256], strides = [1, 1]} : vector<8x512xf32> to vector<8x256xf32>
    %c0_4 = arith.constant 0 : index
    %c0_5 = arith.constant 0 : index
    %6 = vector.load %arg3[%c0_4, %c0_5] : memref<256x256xf32, #tpu.memory_space<vmem>>, vector<256x256xf32>
    %c0_6 = arith.constant 0 : index
    %c0_7 = arith.constant 0 : index
    %7 = vector.load %arg5[%c0_6, %c0_7] : memref<1x256xf32, #tpu.memory_space<vmem>>, vector<1x256xf32>
    %c0_8 = arith.constant 0 : index
    %c0_9 = arith.constant 0 : index
    %8 = vector.load %arg7[%c0_8, %c0_9] : memref<1x256xf32, #tpu.memory_space<vmem>>, vector<1x256xf32>
    %cst_10 = arith.constant dense<0.000000e+00> : vector<8x256xf32>
    %9 = tpu.matmul %5, %6, %cst_10 {dimension_numbers = #tpu.dot_dimension_numbers<[1], [0], [0], [1], [0, 0, 1, 1], [], []>} : vector<8x256xf32>, vector<256x256xf32>, vector<8x256xf32> -> vector<8x256xf32>
    %10 = vector.broadcast %7 : vector<1x256xf32> to vector<8x256xf32>
    %11 = arith.addf %9, %10 : vector<8x256xf32>
    %cst_11 = arith.constant 0.000000e+00 : f32
    %12 = vector.broadcast %cst_11 : f32 to vector<8x256xf32>
    %13 = arith.maximumf %11, %12 : vector<8x256xf32>
    %14 = vector.broadcast %8 : vector<1x256xf32> to vector<8x256xf32>
    %15 = arith.mulf %13, %14 : vector<8x256xf32>
    %cst_12 = arith.constant dense<0.000000e+00> : vector<8xf32>
    %16 = vector.multi_reduction <add>, %15, %cst_12 [1] : vector<8x256xf32> to vector<8xf32>
    %17 = vector.shape_cast %16 : vector<8xf32> to vector<8x1xf32>
    %18 = vector.extract_strided_slice %4 {offsets = [0, 256], sizes = [8, 256], strides = [1, 1]} : vector<8x512xf32> to vector<8x256xf32>
    %c0_13 = arith.constant 0 : index
    %c0_14 = arith.constant 0 : index
    %19 = vector.load %arg4[%c0_13, %c0_14] : memref<256x256xf32, #tpu.memory_space<vmem>>, vector<256x256xf32>
    %c0_15 = arith.constant 0 : index
    %c0_16 = arith.constant 0 : index
    %20 = vector.load %arg6[%c0_15, %c0_16] : memref<1x256xf32, #tpu.memory_space<vmem>>, vector<1x256xf32>
    %c0_17 = arith.constant 0 : index
    %c0_18 = arith.constant 0 : index
    %21 = vector.load %arg8[%c0_17, %c0_18] : memref<1x256xf32, #tpu.memory_space<vmem>>, vector<1x256xf32>
    %cst_19 = arith.constant dense<0.000000e+00> : vector<8x256xf32>
    %22 = tpu.matmul %18, %19, %cst_19 {dimension_numbers = #tpu.dot_dimension_numbers<[1], [0], [0], [1], [0, 0, 1, 1], [], []>} : vector<8x256xf32>, vector<256x256xf32>, vector<8x256xf32> -> vector<8x256xf32>
    %23 = vector.broadcast %20 : vector<1x256xf32> to vector<8x256xf32>
    %24 = arith.addf %22, %23 : vector<8x256xf32>
    %cst_20 = arith.constant 0.000000e+00 : f32
    %25 = vector.broadcast %cst_20 : f32 to vector<8x256xf32>
    %26 = arith.maximumf %24, %25 : vector<8x256xf32>
    %27 = vector.broadcast %21 : vector<1x256xf32> to vector<8x256xf32>
    %28 = arith.mulf %26, %27 : vector<8x256xf32>
    %cst_21 = arith.constant dense<0.000000e+00> : vector<8xf32>
    %29 = vector.multi_reduction <add>, %28, %cst_21 [1] : vector<8x256xf32> to vector<8xf32>
    %30 = vector.shape_cast %29 : vector<8xf32> to vector<8x1xf32>
    %31 = tpu.concatenate %17, %30 in 1 : vector<8x1xf32>, vector<8x1xf32> -> vector<8x2xf32>
    %c0_22 = arith.constant 0 : index
    %c0_23 = arith.constant 0 : index
    %32 = vector.load %arg9[%c0_22, %c0_23] : memref<1x2xf32, #tpu.memory_space<vmem>>, vector<1x2xf32>
    %33 = vector.broadcast %32 : vector<1x2xf32> to vector<8x2xf32>
    %34 = arith.addf %31, %33 : vector<8x2xf32>
    %c0_24 = arith.constant 0 : index
    %c0_25 = arith.constant 0 : index
    %35 = vector.load %arg10[%c0_24, %c0_25] : memref<8x2xf32, #tpu.memory_space<vmem>>, vector<8x2xf32>
    tpu.vector_store %arg10[%c0_24, %c0_25], %34 {strides = array<i32>} : memref<8x2xf32, #tpu.memory_space<vmem>>, vector<8x2xf32>,
    return
  }
  func.func @transform_0(%arg0: i32) -> (i32, i32) {
    %c0_i32 = arith.constant 0 : i32
    %c0_i32_0 = arith.constant 0 : i32
    return %arg0, %c0_i32 : i32, i32
  }
  func.func @transform_1(%arg0: i32) -> (i32, i32) {
    %c0_i32 = arith.constant 0 : i32
    %c0_i32_0 = arith.constant 0 : i32
    %c0_i32_1 = arith.constant 0 : i32
    return %c0_i32, %c0_i32_0 : i32, i32
  }
  func.func @transform_2(%arg0: i32) -> (i32, i32) {
    %c0_i32 = arith.constant 0 : i32
    %c0_i32_0 = arith.constant 0 : i32
    %c0_i32_1 = arith.constant 0 : i32
    return %c0_i32, %c0_i32_0 : i32, i32
  }
  func.func @transform_3(%arg0: i32) -> (i32, i32) {
    %c0_i32 = arith.constant 0 : i32
    %c0_i32_0 = arith.constant 0 : i32
    %c0_i32_1 = arith.constant 0 : i32
    return %c0_i32, %c0_i32_0 : i32, i32
  }
  func.func @transform_4(%arg0: i32) -> (i32, i32) {
    %c0_i32 = arith.constant 0 : i32
    %c0_i32_0 = arith.constant 0 : i32
    %c0_i32_1 = arith.constant 0 : i32
    return %c0_i32, %c0_i32_0 : i32, i32
  }
  func.func @transform_5(%arg0: i32) -> (i32, i32) {
    %c0_i32 = arith.constant 0 : i32
    %c0_i32_0 = arith.constant 0 : i32
    %c0_i32_1 = arith.constant 0 : i32
    return %c0_i32, %c0_i32_0 : i32, i32
  }
  func.func @transform_6(%arg0: i32) -> (i32, i32) {
    %c0_i32 = arith.constant 0 : i32
    %c0_i32_0 = arith.constant 0 : i32
    %c0_i32_1 = arith.constant 0 : i32
    return %c0_i32, %c0_i32_0 : i32, i32
  }
  func.func @transform_7(%arg0: i32) -> (i32, i32) {
    %c0_i32 = arith.constant 0 : i32
    %c0_i32_0 = arith.constant 0 : i32
    %c0_i32_1 = arith.constant 0 : i32
    return %c0_i32, %c0_i32_0 : i32, i32
  }
  func.func @transform_8(%arg0: i32) -> (i32, i32) {
    %c0_i32 = arith.constant 0 : i32
    %c0_i32_0 = arith.constant 0 : i32
    %c0_i32_1 = arith.constant 0 : i32
    return %c0_i32, %c0_i32_0 : i32, i32
  }
  func.func @transform_9(%arg0: i32) -> (i32, i32) {
    %c0_i32 = arith.constant 0 : i32
    %c0_i32_0 = arith.constant 0 : i32
    return %arg0, %c0_i32 : i32, i32
  }
}

</mosaic_0001>

<llo_original>
// kernel: tpu_custom_call.1
$region0: #{tpu_custom_call.1}
  #allocation0 [shape = 'u32[]', space=smem, size = 0x4, offset = 0x4, fixed_abs, tag = 'smem constant byte address 0x4 - core index']
  #allocation1 [shape = 'u32[144,128]{1,0:T(1,128)}', space=vmem, size = 0x12000, scoped, tag = 'internal scratch']
  %s0 = inlined_call_operand.hbm [shape: f32[8,13], index: 0, kind: input, shape index: {}]
  %s1 = inlined_call_operand.hbm [shape: f32[13,512], index: 1, kind: input, shape index: {}]
  %s2 = inlined_call_operand.hbm [shape: f32[256,256], index: 2, kind: input, shape index: {}]
  %s3 = inlined_call_operand.hbm [shape: f32[256,256], index: 3, kind: input, shape index: {}]
  %s4 = inlined_call_operand.vmem [shape: f32[1,256], index: 4, kind: input, shape index: {}]
  %s5 = inlined_call_operand.vmem [shape: f32[1,256], index: 5, kind: input, shape index: {}]
  %s6 = inlined_call_operand.vmem [shape: f32[1,256], index: 6, kind: input, shape index: {}]
  %s7 = inlined_call_operand.vmem [shape: f32[1,256], index: 7, kind: input, shape index: {}]
  %s8 = inlined_call_operand.vmem [shape: f32[1,2], index: 8, kind: input, shape index: {}]
  %s9 = inlined_call_operand.vmem [shape: f32[8,2], index: 9, kind: output, shape index: {}]
  %s10 = sld [smem:[#allocation0]]
  $region62: #{tpu_custom_call.1} parent=0
    _
  %s12 = ssub.s32 1, %s10
  %s13 = scalar_select 0, %s12, %s10
  $region1: #{tpu_custom_call.1} parent=0
    #allocation2 [shape = 'u8[4096]{0}', space=vmem, size = 0x1000, scoped, tag = 'input window, operand 0, single buffered']
    #allocation3 [shape = 's32[1]{0}', space=sflag, size = 0x4, scoped, tag = 'scoped memory for tpu_custom_call.1']
    #allocation4 [shape = 'u8[32768]{0}', space=vmem, size = 0x8000, scoped, tag = 'input window, operand 1, single buffered']
    #allocation5 [shape = 's32[1]{0}', space=sflag, size = 0x4, scoped, tag = 'scoped memory for tpu_custom_call.1']
    #allocation6 [shape = 'u8[262144]{0}', space=vmem, size = 0x40000, scoped, tag = 'input window, operand 2, single buffered']
    #allocation7 [shape = 'u8[262144]{0}', space=vmem, size = 0x40000, scoped, tag = 'input window, operand 3, single buffered']
    #allocation8 [shape = 's32[1]{0}', space=sflag, size = 0x4, scoped, tag = 'scoped memory for tpu_custom_call.1']
    %14 = vsyncpa [#allocation3], 0
    %15 = vsyncpa [#allocation5], 0
    %16 = vsyncpa [#allocation8], 0
    // Predicated region
    $region2: #{tpu_custom_call.1} parent=1 // pred_check
      _
    $region3: #{tpu_custom_call.1} parent=1 // pred_check_branch
      %18 = sbr.rel (0) target = $region5
    $region4: #{tpu_custom_call.1} parent=1 // pred_region
      %s20 = ssub.s32 128, 128
      %21 = vsyncadd [#allocation3], %s20
      %s23 = sshll.u32 [#allocation2], 4
      %s24 = int_to_ptr.vmem [resolvable:$true] %s23
      %26 = dma.hbm_to_vmem [thread:$0]  %s0, 128, %s24, [#allocation3]
    $region5: #{tpu_custom_call.1} parent=1 // pred_fallthru
      _
    // Predicated region
    $region6: #{tpu_custom_call.1} parent=1 // pred_check
      _
    $region7: #{tpu_custom_call.1} parent=1 // pred_check_branch
      %28 = sbr.rel (0) target = $region9
    $region8: #{tpu_custom_call.1} parent=1 // pred_region
      %s30 = ssub.s32 1024, 1024
      %31 = vsyncadd [#allocation5], %s30
      %s32 = sshll.u32 [#allocation4], 4
      %s33 = int_to_ptr.vmem [resolvable:$true] %s32
      %38 = dma.hbm_to_vmem [thread:$0]  %s1, 1024, %s33, [#allocation5], 512, 512, 32
    $region9: #{tpu_custom_call.1} parent=1 // pred_fallthru
      _
    // Predicated region
    $region10: #{tpu_custom_call.1} parent=1 // pred_check
      _
    $region11: #{tpu_custom_call.1} parent=1 // pred_check_branch
      %40 = sbr.rel (0) target = $region13
    $region12: #{tpu_custom_call.1} parent=1 // pred_region
      %s42 = ssub.s32 8192, 8192
      %43 = vsyncadd [#allocation5], %s42
      %s44 = sshll.u32 [#allocation6], 4
      %s45 = int_to_ptr.vmem [resolvable:$true] %s44
      %50 = dma.hbm_to_vmem [thread:$0]  %s2, 8192, %s45, [#allocation5], 256, 256, 16
    $region13: #{tpu_custom_call.1} parent=1 // pred_fallthru
      _
    // Predicated region
    $region14: #{tpu_custom_call.1} parent=1 // pred_check
      _
    $region15: #{tpu_custom_call.1} parent=1 // pred_check_branch
      %52 = sbr.rel (0) target = $region17
    $region16: #{tpu_custom_call.1} parent=1 // pred_region
      %s54 = ssub.s32 8192, 8192
      %55 = vsyncadd [#allocation8], %s54
      %s56 = sshll.u32 [#allocation7], 4
      %s57 = int_to_ptr.vmem [resolvable:$true] %s56
      %62 = dma.hbm_to_vmem [thread:$0]  %s3, 8192, %s57, [#allocation8], 256, 256, 16
    $region17: #{tpu_custom_call.1} parent=1 // pred_fallthru
      _
    // Predicated region
    $region18: #{tpu_custom_call.1} parent=1 // pred_check
      _
    $region19: #{tpu_custom_call.1} parent=1 // pred_check_branch
      %64 = sbr.rel (0) target = $region21
    $region20: #{tpu_custom_call.1} parent=1 // pred_region
      _
    $region21: #{tpu_custom_call.1} parent=1 // pred_fallthru
      _
    // Predicated region
    $region22: #{tpu_custom_call.1} parent=1 // pred_check
      _
    $region23: #{tpu_custom_call.1} parent=1 // pred_check_branch
      %66 = sbr.rel (0) target = $region25
    $region24: #{tpu_custom_call.1} parent=1 // pred_region
      _
    $region25: #{tpu_custom_call.1} parent=1 // pred_fallthru
      _
    // Predicated region
    $region26: #{tpu_custom_call.1} parent=1 // pred_check
      _
    $region27: #{tpu_custom_call.1} parent=1 // pred_check_branch
      %68 = sbr.rel (0) target = $region29
    $region28: #{tpu_custom_call.1} parent=1 // pred_region
      _
    $region29: #{tpu_custom_call.1} parent=1 // pred_fallthru
      _
    // Predicated region
    $region30: #{tpu_custom_call.1} parent=1 // pred_check
      _
    $region31: #{tpu_custom_call.1} parent=1 // pred_check_branch
      %70 = sbr.rel (0) target = $region33
    $region32: #{tpu_custom_call.1} parent=1 // pred_region
      _
    $region33: #{tpu_custom_call.1} parent=1 // pred_fallthru
      _
    // Predicated region
    $region34: #{tpu_custom_call.1} parent=1 // pred_check
      _
    $region35: #{tpu_custom_call.1} parent=1 // pred_check_branch
      %72 = sbr.rel (0) target = $region37
    $region36: #{tpu_custom_call.1} parent=1 // pred_region
      _
    $region37: #{tpu_custom_call.1} parent=1 // pred_fallthru
      _
    // Predicated region
    $region38: #{tpu_custom_call.1} parent=1 // pred_check
      _
    $region39: #{tpu_custom_call.1} parent=1 // pred_check_branch
      %74 = sbr.rel (0) target = $region41
    $region40: #{tpu_custom_call.1} parent=1 // pred_region
      %75 = dma.done [#allocation3], 128
    $region41: #{tpu_custom_call.1} parent=1 // pred_fallthru
      _
    // Predicated region
    $region42: #{tpu_custom_call.1} parent=1 // pred_check
      _
    $region43: #{tpu_custom_call.1} parent=1 // pred_check_branch
      %77 = sbr.rel (0) target = $region45
    $region44: #{tpu_custom_call.1} parent=1 // pred_region
      %78 = dma.done [#allocation5], 1024
    $region45: #{tpu_custom_call.1} parent=1 // pred_fallthru
      _
    // Predicated region
    $region46: #{tpu_custom_call.1} parent=1 // pred_check
      _
    $region47: #{tpu_custom_call.1} parent=1 // pred_check_branch
      %80 = sbr.rel (0) target = $region49
    $region48: #{tpu_custom_call.1} parent=1 // pred_region
      %81 = dma.done [#allocation5], 8192
    $region49: #{tpu_custom_call.1} parent=1 // pred_fallthru
      _
    // Predicated region
    $region50: #{tpu_custom_call.1} parent=1 // pred_check
      _
    $region51: #{tpu_custom_call.1} parent=1 // pred_check_branch
      %83 = sbr.rel (0) target = $region53
    $region52: #{tpu_custom_call.1} parent=1 // pred_region
      %84 = dma.done [#allocation8], 8192
    $region53: #{tpu_custom_call.1} parent=1 // pred_fallthru
      _
    %v85 = vld [vmem:[#allocation2] sm:$0xff]
    %v86 = vld [vmem:[#allocation4] sm:$0xff]
    %v87 = vld [vmem:[#allocation4 + $0x8] sm:$0xff]
    %v88 = vld [vmem:[#allocation4 + $0x10] sm:$0xff]
    %v89 = vld [vmem:[#allocation4 + $0x18] sm:$0xff]
    %v90 = vld [vmem:[#allocation4 + $0x20] sm:$0x1f]
    %v91 = vld [vmem:[#allocation4 + $0x28] sm:$0x1f]
    %v92 = vld [vmem:[#allocation4 + $0x30] sm:$0x1f]
    %v93 = vld [vmem:[#allocation4 + $0x38] sm:$0x1f]
    %vm94 = vcmask 105472
    %v96 = vsel %vm94, %v85, 0
    %vm98 = vcmask 1044480
    %v100 = vsel %vm98, %v90, 0
    %v103 = vsel %vm98, %v91, 0
    %v106 = vsel %vm98, %v92, 0
    %v109 = vsel %vm98, %v93, 0
    %111 = vmatprep.subr.mxu0 0.0
    %112 = vmatpush1.msra.mxu0 0.0
    %113 = vmatprep.subr.mxu0 0.0
    %114 = vmatpush1.msra.mxu0 0.0
    %115 = vmatprep.subr.mxu0 0.0
    %116 = vmatpush1.msra.mxu0 0.0
    %117 = vmatprep.subr.mxu0 0.0
    %118 = vmatpush1.msra.mxu0 0.0
    %119 = vmatprep.subr.mxu0 0.0
    %120 = vmatpush1.msra.mxu0 0.0
    %121 = vmatprep.subr.mxu0 0.0
    %122 = vmatpush1.msra.mxu0 0.0
    %123 = vmatprep.subr.mxu0 0.0
    %124 = vmatpush1.msra.mxu0 0.0
    %125 = vmatprep.subr.mxu0 0.0
    %126 = vmatpush1.msra.mxu0 0.0
    %127 = vmatprep.subr.mxu0 0.0
    %128 = vmatpush1.msra.mxu0 0.0
    %129 = vmatprep.subr.mxu0 0.0
    %130 = vmatpush1.msra.mxu0 0.0
    %131 = vmatprep.subr.mxu0 0.0
    %132 = vmatpush1.msra.mxu0 0.0
    %133 = vmatprep.subr.mxu0 0.0
    %134 = vmatpush1.msra.mxu0 0.0
    %135 = vmatprep.subr.mxu0 0.0
    %136 = vmatpush1.msra.mxu0 0.0
    %137 = vmatprep.subr.mxu0 0.0
    %138 = vmatpush1.msra.mxu0 0.0
    %139 = vmatprep.subr.mxu0 %v103
    %140 = vmatpush1.msra.mxu0 %v100
    %141 = vmatprep.subr.mxu0 %v87
    %142 = vmatpush1.msra.mxu0 %v86
    %143 = vmatprep.subr.mxu0 0.0
    %144 = vmatpush2.msra.mxu0 0.0
    %145 = vmatprep.subr.mxu0 0.0
    %146 = vmatpush2.msra.mxu0 0.0
    %147 = vmatprep.subr.mxu0 0.0
    %148 = vmatpush2.msra.mxu0 0.0
    %149 = vmatprep.subr.mxu0 0.0
    %150 = vmatpush2.msra.mxu0 0.0
    %151 = vmatprep.subr.mxu0 0.0
    %152 = vmatpush2.msra.mxu0 0.0
    %153 = vmatprep.subr.mxu0 0.0
    %154 = vmatpush2.msra.mxu0 0.0
    %155 = vmatprep.subr.mxu0 0.0
    %156 = vmatpush2.msra.mxu0 0.0
    %157 = vmatprep.subr.mxu0 0.0
    %158 = vmatpush2.msra.mxu0 0.0
    %159 = vmatprep.subr.mxu0 0.0
    %160 = vmatpush2.msra.mxu0 0.0
    %161 = vmatprep.subr.mxu0 0.0
    %162 = vmatpush2.msra.mxu0 0.0
    %163 = vmatprep.subr.mxu0 0.0
    %164 = vmatpush2.msra.mxu0 0.0
    %165 = vmatprep.subr.mxu0 0.0
    %166 = vmatpush2.msra.mxu0 0.0
    %167 = vmatprep.subr.mxu0 0.0
    %168 = vmatpush2.msra.mxu0 0.0
    %169 = vmatprep.subr.mxu0 0.0
    %170 = vmatpush2.msra.mxu0 0.0
    %171 = vmatprep.subr.mxu0 0.0
    %172 = vmatpush2.msra.mxu0 0.0
    %173 = vmatprep.subr.mxu0 0.0
    %174 = vmatpush2.msra.mxu0 0.0
    %175 = vmatprep.mubr.f32.mxu0 0.0
    %176 = vmatmul.mubr.f32.gmra.mxu0 %v96
    %v177 = vpop.f32.mrf.mxu0
    %v178 = vadd.f32 0.0, %v177
    %v179 = vpop.f32.mrf.mxu0
    %v180 = vadd.f32 0.0, %v179
    %181 = vdwg.mxu0
    %182 = vmatprep.subr.mxu0 0.0
    %183 = vmatpush1.msra.mxu0 0.0
    %184 = vmatprep.subr.mxu0 0.0
    %185 = vmatpush1.msra.mxu0 0.0
    %186 = vmatprep.subr.mxu0 0.0
    %187 = vmatpush1.msra.mxu0 0.0
    %188 = vmatprep.subr.mxu0 0.0
    %189 = vmatpush1.msra.mxu0 0.0
    %190 = vmatprep.subr.mxu0 0.0
    %191 = vmatpush1.msra.mxu0 0.0
    %192 = vmatprep.subr.mxu0 0.0
    %193 = vmatpush1.msra.mxu0 0.0
    %194 = vmatprep.subr.mxu0 0.0
    %195 = vmatpush1.msra.mxu0 0.0
    %196 = vmatprep.subr.mxu0 0.0
    %197 = vmatpush1.msra.mxu0 0.0
    %198 = vmatprep.subr.mxu0 0.0
    %199 = vmatpush1.msra.mxu0 0.0
    %200 = vmatprep.subr.mxu0 0.0
    %201 = vmatpush1.msra.mxu0 0.0
    %202 = vmatprep.subr.mxu0 0.0
    %203 = vmatpush1.msra.mxu0 0.0
    %204 = vmatprep.subr.mxu0 0.0
    %205 = vmatpush1.msra.mxu0 0.0
    %206 = vmatprep.subr.mxu0 0.0
    %207 = vmatpush1.msra.mxu0 0.0
    %208 = vmatprep.subr.mxu0 0.0
    %209 = vmatpush1.msra.mxu0 0.0
    %210 = vmatprep.subr.mxu0 %v109
    %211 = vmatpush1.msra.mxu0 %v106
    %212 = vmatprep.subr.mxu0 %v89
    %213 = vmatpush1.msra.mxu0 %v88
    %214 = vmatprep.subr.mxu0 0.0
    %215 = vmatpush2.msra.mxu0 0.0
    %216 = vmatprep.subr.mxu0 0.0
    %217 = vmatpush2.msra.mxu0 0.0
    %218 = vmatprep.subr.mxu0 0.0
    %219 = vmatpush2.msra.mxu0 0.0
    %220 = vmatprep.subr.mxu0 0.0
    %221 = vmatpush2.msra.mxu0 0.0
    %222 = vmatprep.subr.mxu0 0.0
    %223 = vmatpush2.msra.mxu0 0.0
    %224 = vmatprep.subr.mxu0 0.0
    %225 = vmatpush2.msra.mxu0 0.0
    %226 = vmatprep.subr.mxu0 0.0
    %227 = vmatpush2.msra.mxu0 0.0
    %228 = vmatprep.subr.mxu0 0.0
    %229 = vmatpush2.msra.mxu0 0.0
    %230 = vmatprep.subr.mxu0 0.0
    %231 = vmatpush2.msra.mxu0 0.0
    %232 = vmatprep.subr.mxu0 0.0
    %233 = vmatpush2.msra.mxu0 0.0
    %234 = vmatprep.subr.mxu0 0.0
    %235 = vmatpush2.msra.mxu0 0.0
    %236 = vmatprep.subr.mxu0 0.0
    %237 = vmatpush2.msra.mxu0 0.0
    %238 = vmatprep.subr.mxu0 0.0
    %239 = vmatpush2.msra.mxu0 0.0
    %240 = vmatprep.subr.mxu0 0.0
    %241 = vmatpush2.msra.mxu0 0.0
    %242 = vmatprep.subr.mxu0 0.0
    %243 = vmatpush2.msra.mxu0 0.0
    %244 = vmatprep.subr.mxu0 0.0
    %245 = vmatpush2.msra.mxu0 0.0
    %246 = vmatprep.mubr.f32.mxu0 0.0
    %247 = vmatmul.mubr.f32.gmra.mxu0 %v96
    %v248 = vpop.f32.mrf.mxu0
    %v249 = vadd.f32 0.0, %v248
    %v250 = vpop.f32.mrf.mxu0
    %v251 = vadd.f32 0.0, %v250
    %252 = vdwg.mxu0
    %v253 = vmax.f32 %v178, 0.0
    %v254 = vmax.f32 %v180, 0.0
    %v255 = vmax.f32 %v249, 0.0
    %v256 = vmax.f32 %v251, 0.0
    %v257 = vld [vmem:[#allocation6] sm:$0xff]
    %v258 = vld [vmem:[#allocation6 + $0x8] sm:$0xff]
    %v259 = vld [vmem:[#allocation6 + $0x10] sm:$0xff]
    %v260 = vld [vmem:[#allocation6 + $0x18] sm:$0xff]
    %v261 = vld [vmem:[#allocation6 + $0x20] sm:$0xff]
    %v262 = vld [vmem:[#allocation6 + $0x28] sm:$0xff]
    %v263 = vld [vmem:[#allocation6 + $0x30] sm:$0xff]
    %v264 = vld [vmem:[#allocation6 + $0x38] sm:$0xff]
    %v265 = vld [vmem:[#allocation6 + $0x40] sm:$0xff]
    %v266 = vld [vmem:[#allocation6 + $0x48] sm:$0xff]
    %v267 = vld [vmem:[#allocation6 + $0x50] sm:$0xff]
    %v268 = vld [vmem:[#allocation6 + $0x58] sm:$0xff]
    %v269 = vld [vmem:[#allocation6 + $0x60] sm:$0xff]
    %v270 = vld [vmem:[#allocation6 + $0x68] sm:$0xff]
    %v271 = vld [vmem:[#allocation6 + $0x70] sm:$0xff]
    %v272 = vld [vmem:[#allocation6 + $0x78] sm:$0xff]
    %v273 = vld [vmem:[#allocation6 + $0x80] sm:$0xff]
    %v274 = vld [vmem:[#allocation6 + $0x88] sm:$0xff]
    %v275 = vld [vmem:[#allocation6 + $0x90] sm:$0xff]
    %v276 = vld [vmem:[#allocation6 + $0x98] sm:$0xff]
    %v277 = vld [vmem:[#allocation6 + $0xa0] sm:$0xff]
    %v278 = vld [vmem:[#allocation6 + $0xa8] sm:$0xff]
    %v279 = vld [vmem:[#allocation6 + $0xb0] sm:$0xff]
    %v280 = vld [vmem:[#allocation6 + $0xb8] sm:$0xff]
    %v281 = vld [vmem:[#allocation6 + $0xc0] sm:$0xff]
    %v282 = vld [vmem:[#allocation6 + $0xc8] sm:$0xff]
    %v283 = vld [vmem:[#allocation6 + $0xd0] sm:$0xff]
    %v284 = vld [vmem:[#allocation6 + $0xd8] sm:$0xff]
    %v285 = vld [vmem:[#allocation6 + $0xe0] sm:$0xff]
    %v286 = vld [vmem:[#allocation6 + $0xe8] sm:$0xff]
    %v287 = vld [vmem:[#allocation6 + $0xf0] sm:$0xff]
    %v288 = vld [vmem:[#allocation6 + $0xf8] sm:$0xff]
    %v289 = vld [vmem:[#allocation6 + $0x100] sm:$0xff]
    %v290 = vld [vmem:[#allocation6 + $0x108] sm:$0xff]
    %v291 = vld [vmem:[#allocation6 + $0x110] sm:$0xff]
    %v292 = vld [vmem:[#allocation6 + $0x118] sm:$0xff]
    %v293 = vld [vmem:[#allocation6 + $0x120] sm:$0xff]
    %v294 = vld [vmem:[#allocation6 + $0x128] sm:$0xff]
    %v295 = vld [vmem:[#allocation6 + $0x130] sm:$0xff]
    %v296 = vld [vmem:[#allocation6 + $0x138] sm:$0xff]
    %v297 = vld [vmem:[#allocation6 + $0x140] sm:$0xff]
    %v298 = vld [vmem:[#allocation6 + $0x148] sm:$0xff]
    %v299 = vld [vmem:[#allocation6 + $0x150] sm:$0xff]
    %v300 = vld [vmem:[#allocation6 + $0x158] sm:$0xff]
    %v301 = vld [vmem:[#allocation6 + $0x160] sm:$0xff]
    %v302 = vld [vmem:[#allocation6 + $0x168] sm:$0xff]
    %v303 = vld [vmem:[#allocation6 + $0x170] sm:$0xff]
    %v304 = vld [vmem:[#allocation6 + $0x178] sm:$0xff]
    %v305 = vld [vmem:[#allocation6 + $0x180] sm:$0xff]
    %v306 = vld [vmem:[#allocation6 + $0x188] sm:$0xff]
    %v307 = vld [vmem:[#allocation6 + $0x190] sm:$0xff]
    %v308 = vld [vmem:[#allocation6 + $0x198] sm:$0xff]
    %v309 = vld [vmem:[#allocation6 + $0x1a0] sm:$0xff]
    %v310 = vld [vmem:[#allocation6 + $0x1a8] sm:$0xff]
    %v311 = vld [vmem:[#allocation6 + $0x1b0] sm:$0xff]
    %v312 = vld [vmem:[#allocation6 + $0x1b8] sm:$0xff]
    %v313 = vld [vmem:[#allocation6 + $0x1c0] sm:$0xff]
    %v314 = vld [vmem:[#allocation6 + $0x1c8] sm:$0xff]
    %v315 = vld [vmem:[#allocation6 + $0x1d0] sm:$0xff]
    %v316 = vld [vmem:[#allocation6 + $0x1d8] sm:$0xff]
    %v317 = vld [vmem:[#allocation6 + $0x1e0] sm:$0xff]
    %v318 = vld [vmem:[#allocation6 + $0x1e8] sm:$0xff]
    %v319 = vld [vmem:[#allocation6 + $0x1f0] sm:$0xff]
    %v320 = vld [vmem:[#allocation6 + $0x1f8] sm:$0xff]
    %v321 = vld [vmem:[%s4] sm:$0x3]
    %v322 = vld [vmem:[%s6] sm:$0x3]
    %v324 = vlaneseq
    %v325 = vshrl.u32 %v324, 7
    %v326 = vsub.s32 0, %v325
    %v327 = vrot.slane %v321, %v326
    %v328 = vlaneseq
    %v329 = vshrl.u32 %v328, 7
    %v330 = vsub.s32 1, %v329
    %v331 = vrot.slane %v321, %v330
    %334 = vmatprep.subr.mxu0 %v288
    %335 = vmatpush1.msra.mxu0 %v287
    %336 = vmatprep.subr.mxu0 %v286
    %337 = vmatpush1.msra.mxu0 %v285
    %338 = vmatprep.subr.mxu0 %v284
    %339 = vmatpush1.msra.mxu0 %v283
    %340 = vmatprep.subr.mxu0 %v282
    %341 = vmatpush1.msra.mxu0 %v281
    %342 = vmatprep.subr.mxu0 %v280
    %343 = vmatpush1.msra.mxu0 %v279
    %344 = vmatprep.subr.mxu0 %v278
    %345 = vmatpush1.msra.mxu0 %v277
    %346 = vmatprep.subr.mxu0 %v276
    %347 = vmatpush1.msra.mxu0 %v275
    %348 = vmatprep.subr.mxu0 %v274
    %349 = vmatpush1.msra.mxu0 %v273
    %350 = vmatprep.subr.mxu0 %v272
    %351 = vmatpush1.msra.mxu0 %v271
    %352 = vmatprep.subr.mxu0 %v270
    %353 = vmatpush1.msra.mxu0 %v269
    %354 = vmatprep.subr.mxu0 %v268
    %355 = vmatpush1.msra.mxu0 %v267
    %356 = vmatprep.subr.mxu0 %v266
    %357 = vmatpush1.msra.mxu0 %v265
    %358 = vmatprep.subr.mxu0 %v264
    %359 = vmatpush1.msra.mxu0 %v263
    %360 = vmatprep.subr.mxu0 %v262
    %361 = vmatpush1.msra.mxu0 %v261
    %362 = vmatprep.subr.mxu0 %v260
    %363 = vmatpush1.msra.mxu0 %v259
    %364 = vmatprep.subr.mxu0 %v258
    %365 = vmatpush1.msra.mxu0 %v257
    %366 = vmatprep.subr.mxu0 %v320
    %367 = vmatpush2.msra.mxu0 %v319
    %368 = vmatprep.subr.mxu0 %v318
    %369 = vmatpush2.msra.mxu0 %v317
    %370 = vmatprep.subr.mxu0 %v316
    %371 = vmatpush2.msra.mxu0 %v315
    %372 = vmatprep.subr.mxu0 %v314
    %373 = vmatpush2.msra.mxu0 %v313
    %374 = vmatprep.subr.mxu0 %v312
    %375 = vmatpush2.msra.mxu0 %v311
    %376 = vmatprep.subr.mxu0 %v310
    %377 = vmatpush2.msra.mxu0 %v309
    %378 = vmatprep.subr.mxu0 %v308
    %379 = vmatpush2.msra.mxu0 %v307
    %380 = vmatprep.subr.mxu0 %v306
    %381 = vmatpush2.msra.mxu0 %v305
    %382 = vmatprep.subr.mxu0 %v304
    %383 = vmatpush2.msra.mxu0 %v303
    %384 = vmatprep.subr.mxu0 %v302
    %385 = vmatpush2.msra.mxu0 %v301
    %386 = vmatprep.subr.mxu0 %v300
    %387 = vmatpush2.msra.mxu0 %v299
    %388 = vmatprep.subr.mxu0 %v298
    %389 = vmatpush2.msra.mxu0 %v297
    %390 = vmatprep.subr.mxu0 %v296
    %391 = vmatpush2.msra.mxu0 %v295
    %392 = vmatprep.subr.mxu0 %v294
    %393 = vmatpush2.msra.mxu0 %v293
    %394 = vmatprep.subr.mxu0 %v292
    %395 = vmatpush2.msra.mxu0 %v291
    %396 = vmatprep.subr.mxu0 %v290
    %397 = vmatpush2.msra.mxu0 %v289
    %398 = vmatprep.mubr.f32.mxu0 %v254
    %399 = vmatmul.mubr.f32.gmra.mxu0 %v253
    %v400 = vpop.f32.mrf.mxu0
    %v401 = vadd.f32 %v327, %v400
    %v402 = vpop.f32.mrf.mxu0
    %v403 = vadd.f32 %v331, %v402
    %404 = vdwg.mxu0
    %v405 = vmax.f32 %v401, 0.0
    %v406 = vmax.f32 %v403, 0.0
    %v408 = vlaneseq
    %v409 = vshrl.u32 %v408, 7
    %v410 = vsub.s32 0, %v409
    %v411 = vrot.slane %v322, %v410
    %v412 = vlaneseq
    %v413 = vshrl.u32 %v412, 7
    %v414 = vsub.s32 1, %v413
    %v415 = vrot.slane %v322, %v414
    %v418 = vmul.f32 %v405, %v411
    %v419 = vmul.f32 %v406, %v415
    %v420 = vadd.f32 %v418, %v419
    %421 = vadd.xlane.f32.xlu0 %v420
    %v422 = vpop.xlane.xlu0 %421
    %v423 = vld [vmem:[#allocation7] sm:$0xff]
    %v424 = vld [vmem:[#allocation7 + $0x8] sm:$0xff]
    %v425 = vld [vmem:[#allocation7 + $0x10] sm:$0xff]
    %v426 = vld [vmem:[#allocation7 + $0x18] sm:$0xff]
    %v427 = vld [vmem:[#allocation7 + $0x20] sm:$0xff]
    %v428 = vld [vmem:[#allocation7 + $0x28] sm:$0xff]
    %v429 = vld [vmem:[#allocation7 + $0x30] sm:$0xff]
    %v430 = vld [vmem:[#allocation7 + $0x38] sm:$0xff]
    %v431 = vld [vmem:[#allocation7 + $0x40] sm:$0xff]
    %v432 = vld [vmem:[#allocation7 + $0x48] sm:$0xff]
    %v433 = vld [vmem:[#allocation7 + $0x50] sm:$0xff]
    %v434 = vld [vmem:[#allocation7 + $0x58] sm:$0xff]
    %v435 = vld [vmem:[#allocation7 + $0x60] sm:$0xff]
    %v436 = vld [vmem:[#allocation7 + $0x68] sm:$0xff]
    %v437 = vld [vmem:[#allocation7 + $0x70] sm:$0xff]
    %v438 = vld [vmem:[#allocation7 + $0x78] sm:$0xff]
    %v439 = vld [vmem:[#allocation7 + $0x80] sm:$0xff]
    %v440 = vld [vmem:[#allocation7 + $0x88] sm:$0xff]
    %v441 = vld [vmem:[#allocation7 + $0x90] sm:$0xff]
    %v442 = vld [vmem:[#allocation7 + $0x98] sm:$0xff]
    %v443 = vld [vmem:[#allocation7 + $0xa0] sm:$0xff]
    %v444 = vld [vmem:[#allocation7 + $0xa8] sm:$0xff]
    %v445 = vld [vmem:[#allocation7 + $0xb0] sm:$0xff]
    %v446 = vld [vmem:[#allocation7 + $0xb8] sm:$0xff]
    %v447 = vld [vmem:[#allocation7 + $0xc0] sm:$0xff]
    %v448 = vld [vmem:[#allocation7 + $0xc8] sm:$0xff]
    %v449 = vld [vmem:[#allocation7 + $0xd0] sm:$0xff]
    %v450 = vld [vmem:[#allocation7 + $0xd8] sm:$0xff]
    %v451 = vld [vmem:[#allocation7 + $0xe0] sm:$0xff]
    %v452 = vld [vmem:[#allocation7 + $0xe8] sm:$0xff]
    %v453 = vld [vmem:[#allocation7 + $0xf0] sm:$0xff]
    %v454 = vld [vmem:[#allocation7 + $0xf8] sm:$0xff]
    %v455 = vld [vmem:[#allocation7 + $0x100] sm:$0xff]
    %v456 = vld [vmem:[#allocation7 + $0x108] sm:$0xff]
    %v457 = vld [vmem:[#allocation7 + $0x110] sm:$0xff]
    %v458 = vld [vmem:[#allocation7 + $0x118] sm:$0xff]
    %v459 = vld [vmem:[#allocation7 + $0x120] sm:$0xff]
    %v460 = vld [vmem:[#allocation7 + $0x128] sm:$0xff]
    %v461 = vld [vmem:[#allocation7 + $0x130] sm:$0xff]
    %v462 = vld [vmem:[#allocation7 + $0x138] sm:$0xff]
    %v463 = vld [vmem:[#allocation7 + $0x140] sm:$0xff]
    %v464 = vld [vmem:[#allocation7 + $0x148] sm:$0xff]
    %v465 = vld [vmem:[#allocation7 + $0x150] sm:$0xff]
    %v466 = vld [vmem:[#allocation7 + $0x158] sm:$0xff]
    %v467 = vld [vmem:[#allocation7 + $0x160] sm:$0xff]
    %v468 = vld [vmem:[#allocation7 + $0x168] sm:$0xff]
    %v469 = vld [vmem:[#allocation7 + $0x170] sm:$0xff]
    %v470 = vld [vmem:[#allocation7 + $0x178] sm:$0xff]
    %v471 = vld [vmem:[#allocation7 + $0x180] sm:$0xff]
    %v472 = vld [vmem:[#allocation7 + $0x188] sm:$0xff]
    %v473 = vld [vmem:[#allocation7 + $0x190] sm:$0xff]
    %v474 = vld [vmem:[#allocation7 + $0x198] sm:$0xff]
    %v475 = vld [vmem:[#allocation7 + $0x1a0] sm:$0xff]
    %v476 = vld [vmem:[#allocation7 + $0x1a8] sm:$0xff]
    %v477 = vld [vmem:[#allocation7 + $0x1b0] sm:$0xff]
    %v478 = vld [vmem:[#allocation7 + $0x1b8] sm:$0xff]
    %v479 = vld [vmem:[#allocation7 + $0x1c0] sm:$0xff]
    %v480 = vld [vmem:[#allocation7 + $0x1c8] sm:$0xff]
    %v481 = vld [vmem:[#allocation7 + $0x1d0] sm:$0xff]
    %v482 = vld [vmem:[#allocation7 + $0x1d8] sm:$0xff]
    %v483 = vld [vmem:[#allocation7 + $0x1e0] sm:$0xff]
    %v484 = vld [vmem:[#allocation7 + $0x1e8] sm:$0xff]
    %v485 = vld [vmem:[#allocation7 + $0x1f0] sm:$0xff]
    %v486 = vld [vmem:[#allocation7 + $0x1f8] sm:$0xff]
    %v487 = vld [vmem:[%s5] sm:$0x3]
    %v488 = vld [vmem:[%s7] sm:$0x3]
    %v490 = vlaneseq
    %v491 = vshrl.u32 %v490, 7
    %v492 = vsub.s32 0, %v491
    %v493 = vrot.slane %v487, %v492
    %v494 = vlaneseq
    %v495 = vshrl.u32 %v494, 7
    %v496 = vsub.s32 1, %v495
    %v497 = vrot.slane %v487, %v496
    %500 = vmatprep.subr.mxu0 %v454
    %501 = vmatpush1.msra.mxu0 %v453
    %502 = vmatprep.subr.mxu0 %v452
    %503 = vmatpush1.msra.mxu0 %v451
    %504 = vmatprep.subr.mxu0 %v450
    %505 = vmatpush1.msra.mxu0 %v449
    %506 = vmatprep.subr.mxu0 %v448
    %507 = vmatpush1.msra.mxu0 %v447
    %508 = vmatprep.subr.mxu0 %v446
    %509 = vmatpush1.msra.mxu0 %v445
    %510 = vmatprep.subr.mxu0 %v444
    %511 = vmatpush1.msra.mxu0 %v443
    %512 = vmatprep.subr.mxu0 %v442
    %513 = vmatpush1.msra.mxu0 %v441
    %514 = vmatprep.subr.mxu0 %v440
    %515 = vmatpush1.msra.mxu0 %v439
    %516 = vmatprep.subr.mxu0 %v438
    %517 = vmatpush1.msra.mxu0 %v437
    %518 = vmatprep.subr.mxu0 %v436
    %519 = vmatpush1.msra.mxu0 %v435
    %520 = vmatprep.subr.mxu0 %v434
    %521 = vmatpush1.msra.mxu0 %v433
    %522 = vmatprep.subr.mxu0 %v432
    %523 = vmatpush1.msra.mxu0 %v431
    %524 = vmatprep.subr.mxu0 %v430
    %525 = vmatpush1.msra.mxu0 %v429
    %526 = vmatprep.subr.mxu0 %v428
    %527 = vmatpush1.msra.mxu0 %v427
    %528 = vmatprep.subr.mxu0 %v426
    %529 = vmatpush1.msra.mxu0 %v425
    %530 = vmatprep.subr.mxu0 %v424
    %531 = vmatpush1.msra.mxu0 %v423
    %532 = vmatprep.subr.mxu0 %v486
    %533 = vmatpush2.msra.mxu0 %v485
    %534 = vmatprep.subr.mxu0 %v484
    %535 = vmatpush2.msra.mxu0 %v483
    %536 = vmatprep.subr.mxu0 %v482
    %537 = vmatpush2.msra.mxu0 %v481
    %538 = vmatprep.subr.mxu0 %v480
    %539 = vmatpush2.msra.mxu0 %v479
    %540 = vmatprep.subr.mxu0 %v478
    %541 = vmatpush2.msra.mxu0 %v477
    %542 = vmatprep.subr.mxu0 %v476
    %543 = vmatpush2.msra.mxu0 %v475
    %544 = vmatprep.subr.mxu0 %v474
    %545 = vmatpush2.msra.mxu0 %v473
    %546 = vmatprep.subr.mxu0 %v472
    %547 = vmatpush2.msra.mxu0 %v471
    %548 = vmatprep.subr.mxu0 %v470
    %549 = vmatpush2.msra.mxu0 %v469
    %550 = vmatprep.subr.mxu0 %v468
    %551 = vmatpush2.msra.mxu0 %v467
    %552 = vmatprep.subr.mxu0 %v466
    %553 = vmatpush2.msra.mxu0 %v465
    %554 = vmatprep.subr.mxu0 %v464
    %555 = vmatpush2.msra.mxu0 %v463
    %556 = vmatprep.subr.mxu0 %v462
    %557 = vmatpush2.msra.mxu0 %v461
    %558 = vmatprep.subr.mxu0 %v460
    %559 = vmatpush2.msra.mxu0 %v459
    %560 = vmatprep.subr.mxu0 %v458
    %561 = vmatpush2.msra.mxu0 %v457
    %562 = vmatprep.subr.mxu0 %v456
    %563 = vmatpush2.msra.mxu0 %v455
    %564 = vmatprep.mubr.f32.mxu0 %v256
    %565 = vmatmul.mubr.f32.gmra.mxu0 %v255
    %v566 = vpop.f32.mrf.mxu0
    %v567 = vadd.f32 %v493, %v566
    %v568 = vpop.f32.mrf.mxu0
    %v569 = vadd.f32 %v497, %v568
    %570 = vdwg.mxu0
    %v571 = vmax.f32 %v567, 0.0
    %v572 = vmax.f32 %v569, 0.0
    %v574 = vlaneseq
    %v575 = vshrl.u32 %v574, 7
    %v576 = vsub.s32 0, %v575
    %v577 = vrot.slane %v488, %v576
    %v578 = vlaneseq
    %v579 = vshrl.u32 %v578, 7
    %v580 = vsub.s32 1, %v579
    %v581 = vrot.slane %v488, %v580
    %v584 = vmul.f32 %v571, %v577
    %v585 = vmul.f32 %v572, %v581
    %v586 = vadd.f32 %v584, %v585
    %587 = vadd.xlane.f32.xlu0 %v586
    %v588 = vpop.xlane.xlu0 %587
    %vm589 = vcmask 7168
    %v590 = vsel %vm589, %v422, %v588
    %v591 = vld [vmem:[%s8] sm:$0x1]
    %v593 = vlaneseq
    %v594 = vshrl.u32 %v593, 7
    %v595 = vsub.s32 0, %v594
    %v596 = vrot.slane %v591, %v595
    %v598 = vadd.f32 %v590, %v596
    %vm599 = vcmask 15360
    %600 = vst.msk [vmem:[%s9] sm:$0xff] %vm599, %v598
    // Predicated region
    $region54: #{tpu_custom_call.1} parent=1 // pred_check
      _
    $region55: #{tpu_custom_call.1} parent=1 // pred_check_branch
      %602 = sbr.rel (0) target = $region57
    $region56: #{tpu_custom_call.1} parent=1 // pred_region
      _
    $region57: #{tpu_custom_call.1} parent=1 // pred_fallthru
      _
    // Predicated region
    $region58: #{tpu_custom_call.1} parent=1 // pred_check
      _
    $region59: #{tpu_custom_call.1} parent=1 // pred_check_branch
      %604 = sbr.rel (0) target = $region61
    $region60: #{tpu_custom_call.1} parent=1 // pred_region
      _
    $region61: #{tpu_custom_call.1} parent=1 // pred_fallthru
      _
    %605 = vsyncpa [#allocation3], 1
    %606 = vsyncpa [#allocation5], 1
    %607 = vsyncpa [#allocation8], 1

</llo_original>
